<compile_context>
chip_gen: v5e
topology: v5e:2x2
jax: 0.10.0
libtpu: 0.0.40
codegen_flags: <defaults>
</compile_context>

<pallas_src>
import jax
import jax.numpy as jnp
from jax.experimental import pallas as pl
from jax.experimental.pallas import tpu as pltpu

# ---- small, deterministic problem sizes -------------------------------------
B, S, D = 2, 8, 32          # batch, seq, d_model
H = 4                       # attention heads
DK = D // H                 # head dim
DFF = 64                    # feed-forward hidden dim
BS = B * S                  # fused batch*seq rows
NEG_INF = -1e9

# ---- packed weight-slab layout (one lane-dense (SLAB_R, 128) operand) -------
SLAB_C = 128
W1_COL = SLAB_C - DFF                 # w1 lives in cols 64:128 of rows D:2D
R_BQKV = 2 * D + DFF                  # 128
R_BO = R_BQKV + 1                     # 129
R_B1 = R_BQKV + 2                     # 130
R_B2 = R_BQKV + 3                     # 131
SLAB_R = ((R_B2 + 1 + 7) // 8) * 8    # 136 (pad rows to a multiple of 8)


# ---- Pallas kernel: whole problem in one invocation --------------------------
def encoder_layer_ffn_kernel(x_ref, bias_ref, w_ref, o_ref):
    xf = x_ref[...]                               # (BS, D)   = (16, 32)
    attn_bias = bias_ref[...]                     # (BS, BS)  = (16, 16)

    # Static slices into the packed weight slab (zero-cost views of VMEM).
    wqkv = w_ref[0:D, 0:3 * D]                    # (32, 96)  scale already folded
    wo   = w_ref[D:2 * D, 0:D]                    # (32, 32)
    w1   = w_ref[D:2 * D, W1_COL:W1_COL + DFF]    # (32, 64)
    w2   = w_ref[2 * D:2 * D + DFF, 0:D]          # (64, 32)
    bqkv = w_ref[R_BQKV:R_BQKV + 1, 0:3 * D]      # (1, 96)
    bo   = w_ref[R_BO:R_BO + 1, 0:D]              # (1, 32)
    b1   = w_ref[R_B1:R_B1 + 1, 0:DFF]            # (1, 64)
    b2   = w_ref[R_B2:R_B2 + 1, 0:D]              # (1, 32)

    # One flat fused QKV projection over the fused batch.
    qkv = jnp.dot(xf, wqkv, preferred_element_type=jnp.float32) + bqkv   # (16, 96)

    # Attention per head over the fused batch; attn_bias carries both the
    # batch block-diagonal structure and the key mask (-1e9 -> exp underflows
    # to exactly 0, matching masked_fill(mask == 0, -1e9) semantics).
    ctx_heads = []
    for h in range(H):                            # H=4, unrolled at trace time
        qh = qkv[:, h * DK:(h + 1) * DK]                      # (16, 8)
        kh = qkv[:, D + h * DK:D + (h + 1) * DK]              # (16, 8)
        vh = qkv[:, 2 * D + h * DK:2 * D + (h + 1) * DK]      # (16, 8)
        s = jnp.einsum("qd,kd->qk", qh, kh,
                       preferred_element_type=jnp.float32) + attn_bias   # (16, 16)
        m = jnp.max(s, axis=-1, keepdims=True)
        p = jnp.exp(s - m)
        l = jnp.sum(p, axis=-1, keepdims=True)                # (16, 1)
        # TODO(synk): attention dropout omitted (inference / p=0 semantics)
        ctx = jnp.dot(p, vh, preferred_element_type=jnp.float32)         # (16, 8)
        ctx_heads.append(ctx * pl.reciprocal(l, approx=True))
    ctx = jnp.concatenate(ctx_heads, axis=-1)                  # (16, 32)

    # Output projection: concat(heads) @ Wo — exactly the reference order.
    attn_out = jnp.dot(ctx, wo, preferred_element_type=jnp.float32) + bo  # (16, 32)

    # Positionwise FFN.
    hdn = jnp.maximum(
        jnp.dot(attn_out, w1, preferred_element_type=jnp.float32) + b1, 0.0)  # (16, 64)
    # TODO(synk): FFN dropout omitted (inference / p=0 semantics)
    out = jnp.dot(hdn, w2, preferred_element_type=jnp.float32) + b2           # (16, 32)

    o_ref[...] = out.astype(o_ref.dtype)


# ---- wrapper-side layout plumbing --------------------------------------------
def _pack_weight_slab(params):
    """Fuse QKV (with 1/sqrt(dk) folded into q), pack all weights/biases into
    one lane-dense (SLAB_R, 128) f32 slab."""
    (wq, bq, wk, bk, wv, bv, wo, bo, w1, b1, w2, b2) = params
    scale = 1.0 / jnp.sqrt(jnp.float32(DK))
    wqkv = jnp.concatenate([wq * scale, wk, wv], axis=1)       # (D, 3D)
    bqkv = jnp.concatenate([bq * scale, bk, bv], axis=1)       # (1, 3D)

    slab = jnp.zeros((SLAB_R, SLAB_C), jnp.float32)
    slab = slab.at[0:D, 0:3 * D].set(wqkv)
    slab = slab.at[D:2 * D, 0:D].set(wo)
    slab = slab.at[D:2 * D, W1_COL:W1_COL + DFF].set(w1)
    slab = slab.at[2 * D:2 * D + DFF, 0:D].set(w2)
    slab = slab.at[R_BQKV, 0:3 * D].set(bqkv[0])
    slab = slab.at[R_BO, 0:D].set(bo.reshape(D))
    slab = slab.at[R_B1, 0:DFF].set(b1.reshape(DFF))
    slab = slab.at[R_B2, 0:D].set(b2.reshape(D))
    return slab


def _attn_bias(mask):
    """Additive (BS, BS) bias: -1e9 for cross-batch pairs and masked keys,
    0 otherwise.  Equivalent to masked_fill(mask == 0, -1e9) per batch."""
    row_batch = jnp.arange(BS) // S                            # (BS,)
    same_batch = row_batch[:, None] == row_batch[None, :]      # (BS, BS)
    key_ok = mask.reshape(BS) != 0.0                           # (BS,)
    allowed = same_batch & key_ok[None, :]
    return jnp.where(allowed, 0.0, NEG_INF).astype(jnp.float32)


@jax.jit
def encoder_layer_ffn(x, mask, params):
    xf = x.reshape(BS, D)                                      # (16, 32)
    bias = _attn_bias(mask)                                    # (16, 16)
    slab = _pack_weight_slab(params)                           # (136, 128)

    out = pl.pallas_call(
        encoder_layer_ffn_kernel,
        out_shape=jax.ShapeDtypeStruct((BS, D), jnp.float32),
        in_specs=[
            pl.BlockSpec(memory_space=pltpu.MemorySpace.VMEM),   # x
            pl.BlockSpec(memory_space=pltpu.MemorySpace.VMEM),   # attention bias
            pl.BlockSpec(memory_space=pltpu.MemorySpace.VMEM),   # packed weights
        ],
        out_specs=pl.BlockSpec(memory_space=pltpu.MemorySpace.VMEM),
    )(xf, bias, slab)

    return out.reshape(B, S, D)


# ---- pure-JAX reference (same math) for a sanity check -----------------------
def reference(x, mask, params):
    (wq, bq, wk, bk, wv, bv, wo, bo, w1, b1, w2, b2) = params
    q = x @ wq + bq
    k = x @ wk + bk
    v = x @ wv + bv

    def split(t):
        return t.reshape(B, S, H, DK).transpose(0, 2, 1, 3)

    qh, kh, vh = split(q), split(k), split(v)
    scores = jnp.einsum("bhqd,bhkd->bhqk", qh, kh) / jnp.sqrt(jnp.float32(DK))
    scores = jnp.where(mask[:, None, :, :] == 0.0, NEG_INF, scores)
    attn = jax.nn.softmax(scores, axis=-1)
    oh = jnp.einsum("bhqk,bhkd->bhqd", attn, vh)
    o = oh.transpose(0, 2, 1, 3).reshape(B, S, D) @ wo + bo
    hdn = jnp.maximum(o @ w1 + b1, 0.0)
    return hdn @ w2 + b2


# ---- deterministic parameter init --------------------------------------------
def init_params(key):
    keys = jax.random.split(key, 6)
    s = 0.05
    wq = s * jax.random.normal(keys[0], (D, D), jnp.float32)
    wk = s * jax.random.normal(keys[1], (D, D), jnp.float32)
    wv = s * jax.random.normal(keys[2], (D, D), jnp.float32)
    wo = s * jax.random.normal(keys[3], (D, D), jnp.float32)
    w1 = s * jax.random.normal(keys[4], (D, DFF), jnp.float32)
    w2 = s * jax.random.normal(keys[5], (DFF, D), jnp.float32)
    bq = jnp.zeros((1, D), jnp.float32)
    bk = jnp.zeros((1, D), jnp.float32)
    bv = jnp.zeros((1, D), jnp.float32)
    bo = jnp.full((1, D), 0.01, jnp.float32)
    b1 = jnp.full((1, DFF), 0.01, jnp.float32)
    b2 = jnp.full((1, D), 0.01, jnp.float32)
    return (wq, bq, wk, bk, wv, bv, wo, bo, w1, b1, w2, b2)


if __name__ == "__main__":
    key = jax.random.PRNGKey(0)
    kx, kp = jax.random.split(key)
    x = jax.random.normal(kx, (B, S, D), jnp.float32)
    # mask: last two key positions of batch 1 masked out, batch 0 fully visible
    mask = jnp.ones((B, 1, S), jnp.float32)
    mask = mask.at[1, 0, S - 2:].set(0.0)

    params = init_params(kp)

    out = encoder_layer_ffn(x, mask, params)
    out = jax.block_until_ready(out)

    ref = reference(x, mask, params)
    assert out.shape == (B, S, D)
    assert jnp.allclose(out, ref, atol=1e-3, rtol=1e-3), \
        f"max abs err {jnp.max(jnp.abs(out - ref))}"

    print("KERNEL_OK")
</pallas_src>

<mosaic_0001>
module attributes {stable_mosaic.version = 11 : i64} {
  func.func @encoder_layer_ffn_kernel(%arg0: memref<16x32xf32, #tpu.memory_space<vmem>>, %arg1: memref<16x16xf32, #tpu.memory_space<vmem>>, %arg2: memref<136x128xf32, #tpu.memory_space<vmem>>, %arg3: memref<16x32xf32, #tpu.memory_space<vmem>>) attributes {dimension_semantics = [], scalar_prefetch = 0 : i64, scratch_operands = 0 : i64, tpu.core_type = #tpu.core_type<tc>} {
    %c0 = arith.constant 0 : index
    %c0_0 = arith.constant 0 : index
    %0 = vector.load %arg0[%c0, %c0_0] : memref<16x32xf32, #tpu.memory_space<vmem>>, vector<16x32xf32>
    %c0_1 = arith.constant 0 : index
    %c0_2 = arith.constant 0 : index
    %1 = vector.load %arg1[%c0_1, %c0_2] : memref<16x16xf32, #tpu.memory_space<vmem>>, vector<16x16xf32>
    %c0_3 = arith.constant 0 : index
    %c0_4 = arith.constant 0 : index
    %2 = vector.load %arg2[%c0_3, %c0_4] : memref<136x128xf32, #tpu.memory_space<vmem>>, vector<32x96xf32>
    %c32 = arith.constant 32 : index
    %c0_5 = arith.constant 0 : index
    %3 = vector.load %arg2[%c32, %c0_5] : memref<136x128xf32, #tpu.memory_space<vmem>>, vector<32x32xf32>
    %c32_6 = arith.constant 32 : index
    %c64 = arith.constant 64 : index
    %4 = vector.load %arg2[%c32_6, %c64] : memref<136x128xf32, #tpu.memory_space<vmem>>, vector<32x64xf32>
    %c64_7 = arith.constant 64 : index
    %c0_8 = arith.constant 0 : index
    %5 = vector.load %arg2[%c64_7, %c0_8] : memref<136x128xf32, #tpu.memory_space<vmem>>, vector<64x32xf32>
    %c128 = arith.constant 128 : index
    %c0_9 = arith.constant 0 : index
    %6 = vector.load %arg2[%c128, %c0_9] : memref<136x128xf32, #tpu.memory_space<vmem>>, vector<1x96xf32>
    %c129 = arith.constant 129 : index
    %c0_10 = arith.constant 0 : index
    %7 = vector.load %arg2[%c129, %c0_10] : memref<136x128xf32, #tpu.memory_space<vmem>>, vector<1x32xf32>
    %c130 = arith.constant 130 : index
    %c0_11 = arith.constant 0 : index
    %8 = vector.load %arg2[%c130, %c0_11] : memref<136x128xf32, #tpu.memory_space<vmem>>, vector<1x64xf32>
    %c131 = arith.constant 131 : index
    %c0_12 = arith.constant 0 : index
    %9 = vector.load %arg2[%c131, %c0_12] : memref<136x128xf32, #tpu.memory_space<vmem>>, vector<1x32xf32>
    %cst = arith.constant dense<0.000000e+00> : vector<16x96xf32>
    %10 = tpu.matmul %0, %2, %cst {dimension_numbers = #tpu.dot_dimension_numbers<[1], [0], [0], [1], [0, 0, 1, 1], [], []>} : vector<16x32xf32>, vector<32x96xf32>, vector<16x96xf32> -> vector<16x96xf32>
    %11 = vector.broadcast %6 : vector<1x96xf32> to vector<16x96xf32>
    %12 = arith.addf %10, %11 : vector<16x96xf32>
    %13 = vector.extract_strided_slice %12 {offsets = [0, 0], sizes = [16, 8], strides = [1, 1]} : vector<16x96xf32> to vector<16x8xf32>
    %14 = vector.extract_strided_slice %12 {offsets = [0, 32], sizes = [16, 8], strides = [1, 1]} : vector<16x96xf32> to vector<16x8xf32>
    %15 = vector.extract_strided_slice %12 {offsets = [0, 64], sizes = [16, 8], strides = [1, 1]} : vector<16x96xf32> to vector<16x8xf32>
    "tpu.trace_start"() <{level = 10 : i32, message = "qd,kd->qk"}> : () -> ()
    %cst_13 = arith.constant dense<0.000000e+00> : vector<16x16xf32>
    %16 = tpu.matmul %13, %14, %cst_13 {dimension_numbers = #tpu.dot_dimension_numbers<[1], [1], [0], [0], [0, 0, 1, 0], [], []>} : vector<16x8xf32>, vector<16x8xf32>, vector<16x16xf32> -> vector<16x16xf32>
    "tpu.trace_stop"() : () -> ()
    %17 = arith.addf %16, %1 : vector<16x16xf32>
    %cst_14 = arith.constant dense<0xFF800000> : vector<16xf32>
    %18 = vector.multi_reduction <maximumf>, %17, %cst_14 [1] : vector<16x16xf32> to vector<16xf32>
    %19 = vector.shape_cast %18 : vector<16xf32> to vector<16x1xf32>
    %20 = vector.broadcast %19 : vector<16x1xf32> to vector<16x16xf32>
    %21 = arith.subf %17, %20 : vector<16x16xf32>
    %22 = math.exp %21 : vector<16x16xf32>
    %cst_15 = arith.constant dense<0.000000e+00> : vector<16xf32>
    %23 = vector.multi_reduction <add>, %22, %cst_15 [1] : vector<16x16xf32> to vector<16xf32>
    %24 = vector.shape_cast %23 : vector<16xf32> to vector<16x1xf32>
    %cst_16 = arith.constant dense<0.000000e+00> : vector<16x8xf32>
    %25 = tpu.matmul %22, %15, %cst_16 {dimension_numbers = #tpu.dot_dimension_numbers<[1], [0], [0], [1], [0, 0, 1, 1], [], []>} : vector<16x16xf32>, vector<16x8xf32>, vector<16x8xf32> -> vector<16x8xf32>
    %26 = tpu.reciprocal %24 {approx = true} : vector<16x1xf32> -> vector<16x1xf32>
    %27 = vector.broadcast %26 : vector<16x1xf32> to vector<16x8xf32>
    %28 = arith.mulf %25, %27 : vector<16x8xf32>
    %29 = vector.extract_strided_slice %12 {offsets = [0, 8], sizes = [16, 8], strides = [1, 1]} : vector<16x96xf32> to vector<16x8xf32>
    %30 = vector.extract_strided_slice %12 {offsets = [0, 40], sizes = [16, 8], strides = [1, 1]} : vector<16x96xf32> to vector<16x8xf32>
    %31 = vector.extract_strided_slice %12 {offsets = [0, 72], sizes = [16, 8], strides = [1, 1]} : vector<16x96xf32> to vector<16x8xf32>
    "tpu.trace_start"() <{level = 10 : i32, message = "qd,kd->qk"}> : () -> ()
    %cst_17 = arith.constant dense<0.000000e+00> : vector<16x16xf32>
    %32 = tpu.matmul %29, %30, %cst_17 {dimension_numbers = #tpu.dot_dimension_numbers<[1], [1], [0], [0], [0, 0, 1, 0], [], []>} : vector<16x8xf32>, vector<16x8xf32>, vector<16x16xf32> -> vector<16x16xf32>
    "tpu.trace_stop"() : () -> ()
    %33 = arith.addf %32, %1 : vector<16x16xf32>
    %cst_18 = arith.constant dense<0xFF800000> : vector<16xf32>
    %34 = vector.multi_reduction <maximumf>, %33, %cst_18 [1] : vector<16x16xf32> to vector<16xf32>
    %35 = vector.shape_cast %34 : vector<16xf32> to vector<16x1xf32>
    %36 = vector.broadcast %35 : vector<16x1xf32> to vector<16x16xf32>
    %37 = arith.subf %33, %36 : vector<16x16xf32>
    %38 = math.exp %37 : vector<16x16xf32>
    %cst_19 = arith.constant dense<0.000000e+00> : vector<16xf32>
    %39 = vector.multi_reduction <add>, %38, %cst_19 [1] : vector<16x16xf32> to vector<16xf32>
    %40 = vector.shape_cast %39 : vector<16xf32> to vector<16x1xf32>
    %cst_20 = arith.constant dense<0.000000e+00> : vector<16x8xf32>
    %41 = tpu.matmul %38, %31, %cst_20 {dimension_numbers = #tpu.dot_dimension_numbers<[1], [0], [0], [1], [0, 0, 1, 1], [], []>} : vector<16x16xf32>, vector<16x8xf32>, vector<16x8xf32> -> vector<16x8xf32>
    %42 = tpu.reciprocal %40 {approx = true} : vector<16x1xf32> -> vector<16x1xf32>
    %43 = vector.broadcast %42 : vector<16x1xf32> to vector<16x8xf32>
    %44 = arith.mulf %41, %43 : vector<16x8xf32>
    %45 = vector.extract_strided_slice %12 {offsets = [0, 16], sizes = [16, 8], strides = [1, 1]} : vector<16x96xf32> to vector<16x8xf32>
    %46 = vector.extract_strided_slice %12 {offsets = [0, 48], sizes = [16, 8], strides = [1, 1]} : vector<16x96xf32> to vector<16x8xf32>
    %47 = vector.extract_strided_slice %12 {offsets = [0, 80], sizes = [16, 8], strides = [1, 1]} : vector<16x96xf32> to vector<16x8xf32>
    "tpu.trace_start"() <{level = 10 : i32, message = "qd,kd->qk"}> : () -> ()
    %cst_21 = arith.constant dense<0.000000e+00> : vector<16x16xf32>
    %48 = tpu.matmul %45, %46, %cst_21 {dimension_numbers = #tpu.dot_dimension_numbers<[1], [1], [0], [0], [0, 0, 1, 0], [], []>} : vector<16x8xf32>, vector<16x8xf32>, vector<16x16xf32> -> vector<16x16xf32>
    "tpu.trace_stop"() : () -> ()
    %49 = arith.addf %48, %1 : vector<16x16xf32>
    %cst_22 = arith.constant dense<0xFF800000> : vector<16xf32>
    %50 = vector.multi_reduction <maximumf>, %49, %cst_22 [1] : vector<16x16xf32> to vector<16xf32>
    %51 = vector.shape_cast %50 : vector<16xf32> to vector<16x1xf32>
    %52 = vector.broadcast %51 : vector<16x1xf32> to vector<16x16xf32>
    %53 = arith.subf %49, %52 : vector<16x16xf32>
    %54 = math.exp %53 : vector<16x16xf32>
    %cst_23 = arith.constant dense<0.000000e+00> : vector<16xf32>
    %55 = vector.multi_reduction <add>, %54, %cst_23 [1] : vector<16x16xf32> to vector<16xf32>
    %56 = vector.shape_cast %55 : vector<16xf32> to vector<16x1xf32>
    %cst_24 = arith.constant dense<0.000000e+00> : vector<16x8xf32>
    %57 = tpu.matmul %54, %47, %cst_24 {dimension_numbers = #tpu.dot_dimension_numbers<[1], [0], [0], [1], [0, 0, 1, 1], [], []>} : vector<16x16xf32>, vector<16x8xf32>, vector<16x8xf32> -> vector<16x8xf32>
    %58 = tpu.reciprocal %56 {approx = true} : vector<16x1xf32> -> vector<16x1xf32>
    %59 = vector.broadcast %58 : vector<16x1xf32> to vector<16x8xf32>
    %60 = arith.mulf %57, %59 : vector<16x8xf32>
    %61 = vector.extract_strided_slice %12 {offsets = [0, 24], sizes = [16, 8], strides = [1, 1]} : vector<16x96xf32> to vector<16x8xf32>
    %62 = vector.extract_strided_slice %12 {offsets = [0, 56], sizes = [16, 8], strides = [1, 1]} : vector<16x96xf32> to vector<16x8xf32>
    %63 = vector.extract_strided_slice %12 {offsets = [0, 88], sizes = [16, 8], strides = [1, 1]} : vector<16x96xf32> to vector<16x8xf32>
    "tpu.trace_start"() <{level = 10 : i32, message = "qd,kd->qk"}> : () -> ()
    %cst_25 = arith.constant dense<0.000000e+00> : vector<16x16xf32>
    %64 = tpu.matmul %61, %62, %cst_25 {dimension_numbers = #tpu.dot_dimension_numbers<[1], [1], [0], [0], [0, 0, 1, 0], [], []>} : vector<16x8xf32>, vector<16x8xf32>, vector<16x16xf32> -> vector<16x16xf32>
    "tpu.trace_stop"() : () -> ()
    %65 = arith.addf %64, %1 : vector<16x16xf32>
    %cst_26 = arith.constant dense<0xFF800000> : vector<16xf32>
    %66 = vector.multi_reduction <maximumf>, %65, %cst_26 [1] : vector<16x16xf32> to vector<16xf32>
    %67 = vector.shape_cast %66 : vector<16xf32> to vector<16x1xf32>
    %68 = vector.broadcast %67 : vector<16x1xf32> to vector<16x16xf32>
    %69 = arith.subf %65, %68 : vector<16x16xf32>
    %70 = math.exp %69 : vector<16x16xf32>
    %cst_27 = arith.constant dense<0.000000e+00> : vector<16xf32>
    %71 = vector.multi_reduction <add>, %70, %cst_27 [1] : vector<16x16xf32> to vector<16xf32>
    %72 = vector.shape_cast %71 : vector<16xf32> to vector<16x1xf32>
    %cst_28 = arith.constant dense<0.000000e+00> : vector<16x8xf32>
    %73 = tpu.matmul %70, %63, %cst_28 {dimension_numbers = #tpu.dot_dimension_numbers<[1], [0], [0], [1], [0, 0, 1, 1], [], []>} : vector<16x16xf32>, vector<16x8xf32>, vector<16x8xf32> -> vector<16x8xf32>
    %74 = tpu.reciprocal %72 {approx = true} : vector<16x1xf32> -> vector<16x1xf32>
    %75 = vector.broadcast %74 : vector<16x1xf32> to vector<16x8xf32>
    %76 = arith.mulf %73, %75 : vector<16x8xf32>
    %77 = tpu.concatenate %28, %44, %60, %76 in 1 : vector<16x8xf32>, vector<16x8xf32>, vector<16x8xf32>, vector<16x8xf32> -> vector<16x32xf32>
    %cst_29 = arith.constant dense<0.000000e+00> : vector<16x32xf32>
    %78 = tpu.matmul %77, %3, %cst_29 {dimension_numbers = #tpu.dot_dimension_numbers<[1], [0], [0], [1], [0, 0, 1, 1], [], []>} : vector<16x32xf32>, vector<32x32xf32>, vector<16x32xf32> -> vector<16x32xf32>
    %79 = vector.broadcast %7 : vector<1x32xf32> to vector<16x32xf32>
    %80 = arith.addf %78, %79 : vector<16x32xf32>
    %cst_30 = arith.constant dense<0.000000e+00> : vector<16x64xf32>
    %81 = tpu.matmul %80, %4, %cst_30 {dimension_numbers = #tpu.dot_dimension_numbers<[1], [0], [0], [1], [0, 0, 1, 1], [], []>} : vector<16x32xf32>, vector<32x64xf32>, vector<16x64xf32> -> vector<16x64xf32>
    %82 = vector.broadcast %8 : vector<1x64xf32> to vector<16x64xf32>
    %83 = arith.addf %81, %82 : vector<16x64xf32>
    %cst_31 = arith.constant 0.000000e+00 : f32
    %84 = vector.broadcast %cst_31 : f32 to vector<16x64xf32>
    %85 = arith.maximumf %83, %84 : vector<16x64xf32>
    %cst_32 = arith.constant dense<0.000000e+00> : vector<16x32xf32>
    %86 = tpu.matmul %85, %5, %cst_32 {dimension_numbers = #tpu.dot_dimension_numbers<[1], [0], [0], [1], [0, 0, 1, 1], [], []>} : vector<16x64xf32>, vector<64x32xf32>, vector<16x32xf32> -> vector<16x32xf32>
    %87 = vector.broadcast %9 : vector<1x32xf32> to vector<16x32xf32>
    %88 = arith.addf %86, %87 : vector<16x32xf32>
    %c0_33 = arith.constant 0 : index
    %c0_34 = arith.constant 0 : index
    %89 = vector.load %arg3[%c0_33, %c0_34] : memref<16x32xf32, #tpu.memory_space<vmem>>, vector<16x32xf32>
    tpu.vector_store %arg3[%c0_33, %c0_34], %88 {strides = array<i32>} : memref<16x32xf32, #tpu.memory_space<vmem>>, vector<16x32xf32>,
    return
  }
}

</mosaic_0001>

<llo_original>
// kernel: encoder_layer_ffn.1
$region0: #{encoder_layer_ffn.1}
  #allocation0 [shape = 'u32[]', space=smem, size = 0x4, offset = 0x4, fixed_abs, tag = 'smem constant byte address 0x4 - core index']
  #allocation1 [shape = 'u32[72,128]{1,0:T(1,128)}', space=vmem, size = 0x9000, scoped, tag = 'internal scratch']
  %s0 = inlined_call_operand.vmem [shape: f32[16,32], index: 0, kind: input, shape index: {}]
  %s1 = inlined_call_operand.vmem [shape: f32[16,16], index: 1, kind: input, shape index: {}]
  %s2 = inlined_call_operand.vmem [shape: f32[136,128], index: 2, kind: input, shape index: {}]
  %s3 = inlined_call_operand.hbm [shape: f32[16,32], index: 3, kind: output, shape index: {}]
  %s4 = sld [smem:[#allocation0]]
  $region22: #{encoder_layer_ffn.1} parent=0
    _
  %s6 = ssub.s32 1, %s4
  %s7 = scalar_select 0, %s6, %s4
  $region1: #{encoder_layer_ffn.1} parent=0
    #allocation2 [shape = 'u8[8192]{0}', space=vmem, size = 0x2000, scoped, tag = 'output window, operand 0, single buffered']
    #allocation3 [shape = 's32[1]{0}', space=sflag, size = 0x4, scoped, tag = 'scoped memory for encoder_layer_ffn.1']
    %8 = vsyncpa [#allocation3], 0
    // Predicated region
    $region2: #{encoder_layer_ffn.1} parent=1 // pred_check
      _
    $region3: #{encoder_layer_ffn.1} parent=1 // pred_check_branch
      %10 = sbr.rel (0) target = $region5
    $region4: #{encoder_layer_ffn.1} parent=1 // pred_region
      _
    $region5: #{encoder_layer_ffn.1} parent=1 // pred_fallthru
      _
    // Predicated region
    $region6: #{encoder_layer_ffn.1} parent=1 // pred_check
      _
    $region7: #{encoder_layer_ffn.1} parent=1 // pred_check_branch
      %12 = sbr.rel (0) target = $region9
    $region8: #{encoder_layer_ffn.1} parent=1 // pred_region
      _
    $region9: #{encoder_layer_ffn.1} parent=1 // pred_fallthru
      _
    // Predicated region
    $region10: #{encoder_layer_ffn.1} parent=1 // pred_check
      _
    $region11: #{encoder_layer_ffn.1} parent=1 // pred_check_branch
      %14 = sbr.rel (0) target = $region13
    $region12: #{encoder_layer_ffn.1} parent=1 // pred_region
      _
    $region13: #{encoder_layer_ffn.1} parent=1 // pred_fallthru
      _
    %v15 = vld [vmem:[%s0] sm:$0xff]
    %v16 = vld [vmem:[%s0 + $0x8] sm:$0xff]
    %v17 = vld [vmem:[%s1] sm:$0xff]
    %v18 = vld [vmem:[%s1 + $0x8] sm:$0xff]
    %v19 = vld [vmem:[%s2] sm:$0xff]
    %v20 = vld [vmem:[%s2 + $0x8] sm:$0xff]
    %v21 = vld [vmem:[%s2 + $0x10] sm:$0xff]
    %v22 = vld [vmem:[%s2 + $0x18] sm:$0xff]
    %v23 = vld [vmem:[%s2 + $0x20] sm:$0xff]
    %v24 = vld [vmem:[%s2 + $0x28] sm:$0xff]
    %v25 = vld [vmem:[%s2 + $0x30] sm:$0xff]
    %v26 = vld [vmem:[%s2 + $0x38] sm:$0xff]
    %v27 = vld [vmem:[%s2 + $0x40] sm:$0xff]
    %v28 = vld [vmem:[%s2 + $0x48] sm:$0xff]
    %v29 = vld [vmem:[%s2 + $0x50] sm:$0xff]
    %v30 = vld [vmem:[%s2 + $0x58] sm:$0xff]
    %v31 = vld [vmem:[%s2 + $0x60] sm:$0xff]
    %v32 = vld [vmem:[%s2 + $0x68] sm:$0xff]
    %v33 = vld [vmem:[%s2 + $0x70] sm:$0xff]
    %v34 = vld [vmem:[%s2 + $0x78] sm:$0xff]
    %v35 = vld [vmem:[%s2 + $0x80] sm:$0x1]
    %v36 = vld [vmem:[%s2 + $0x81] sm:$0x1]
    %v37 = vld [vmem:[%s2 + $0x82] sm:$0x1]
    %v38 = vld [vmem:[%s2 + $0x83] sm:$0x1]
    %v39 = vperm.slane %v35, 0
    %vm40 = vcmask 261120
    %v42 = vsel %vm40, %v15, 0
    %v45 = vsel %vm40, %v16, 0
    %47 = vmatpush.msra.mxu0 0.0
    %48 = vmatpush.msra.mxu0 0.0
    %49 = vmatpush.msra.mxu0 0.0
    %50 = vmatpush.msra.mxu0 0.0
    %51 = vmatpush.msra.mxu0 0.0
    %52 = vmatpush.msra.mxu0 0.0
    %53 = vmatpush.msra.mxu0 0.0
    %54 = vmatpush.msra.mxu0 0.0
    %55 = vmatpush.msra.mxu0 0.0
    %56 = vmatpush.msra.mxu0 0.0
    %57 = vmatpush.msra.mxu0 0.0
    %58 = vmatpush.msra.mxu0 0.0
    %59 = vmatpush.msra.mxu0 %v22
    %60 = vmatpush.msra.mxu0 %v21
    %61 = vmatpush.msra.mxu0 %v20
    %62 = vmatpush.msra.mxu0 %v19
    %63 = vmatmul.f32.gmra.mxu0 %v42
    %v64 = vpop.f32.mrf.mxu0
    %v65 = vadd.f32 %v39, %v64
    %66 = vmatmul.f32.gmra.mxu0 %v45
    %v67 = vpop.f32.mrf.mxu0
    %v68 = vadd.f32 %v39, %v67
    %69 = vdwg.mxu0
    %72 = vrot.lane.b32.xlu0 %v65, 96
    %v73 = vpop.permute.xlu0 %72
    %74 = vrot.lane.b32.xlu0 %v68, 96
    %v75 = vpop.permute.xlu0 %74
    %vm76 = vcmask 64512
    %v77 = vsel %vm76, %v65, 0
    %v79 = vsel %vm76, %v68, 0
    %v81 = vsel %vm76, %v73, 0
    %v83 = vsel %vm76, %v75, 0
    %85 = vmatpush.xpose.msra.mxu0 0.0
    %86 = vmatpush.xpose.msra.mxu0 0.0
    %87 = vmatpush.xpose.msra.mxu0 0.0
    %88 = vmatpush.xpose.msra.mxu0 0.0
    %89 = vmatpush.xpose.msra.mxu0 0.0
    %90 = vmatpush.xpose.msra.mxu0 0.0
    %91 = vmatpush.xpose.msra.mxu0 0.0
    %92 = vmatpush.xpose.msra.mxu0 0.0
    %93 = vmatpush.xpose.msra.mxu0 0.0
    %94 = vmatpush.xpose.msra.mxu0 0.0
    %95 = vmatpush.xpose.msra.mxu0 0.0
    %96 = vmatpush.xpose.msra.mxu0 0.0
    %97 = vmatpush.xpose.msra.mxu0 0.0
    %98 = vmatpush.xpose.msra.mxu0 0.0
    %99 = vmatpush.xpose.msra.mxu0 %v83
    %100 = vmatpush.xpose.msra.mxu0 %v81
    %101 = vmatmul.f32.gmra.mxu0 %v77
    %v102 = vpop.f32.mrf.mxu0
    %v103 = vadd.f32 %v17, %v102
    %104 = vmatmul.f32.gmra.mxu0 %v79
    %v105 = vpop.f32.mrf.mxu0
    %v106 = vadd.f32 %v18, %v105
    %107 = vdwg.mxu0
    %vm108 = vcmask 130048
    %v109 = vsel %vm108, %v103, -inf
    %110 = vmax.xlane.f32.xlu0 %v109
    %v111 = vpop.xlane.xlu0 %110
    %v112 = vsel %vm108, %v106, -inf
    %113 = vmax.xlane.f32.xlu0 %v112
    %v114 = vpop.xlane.xlu0 %113
    %v115 = vsub.f32 %v103, %v111
    %v116 = vsub.f32 %v106, %v114
    %v117 = vmul.f32 %v115, 1.442695
    %v118 = vpow.pop %v117
    %v119 = vmul.f32 %v116, 1.442695
    %v120 = vpow.pop %v119
    %v121 = vsel %vm108, %v118, 0.0
    %122 = vadd.xlane.f32.xlu0 %v121
    %v123 = vpop.xlane.xlu0 %122
    %v124 = vsel %vm108, %v120, 0.0
    %125 = vadd.xlane.f32.xlu0 %v124
    %v126 = vpop.xlane.xlu0 %125
    %127 = vrot.lane.b32.xlu0 %v65, 64
    %v128 = vpop.permute.xlu0 %127
    %129 = vrot.lane.b32.xlu0 %v68, 64
    %v130 = vpop.permute.xlu0 %129
    %v134 = vsel %vm108, %v118, 0
    %v137 = vsel %vm108, %v120, 0
    %139 = vmatpush.msra.mxu0 0.0
    %140 = vmatpush.msra.mxu0 0.0
    %141 = vmatpush.msra.mxu0 0.0
    %142 = vmatpush.msra.mxu0 0.0
    %143 = vmatpush.msra.mxu0 0.0
    %144 = vmatpush.msra.mxu0 0.0
    %145 = vmatpush.msra.mxu0 0.0
    %146 = vmatpush.msra.mxu0 0.0
    %147 = vmatpush.msra.mxu0 0.0
    %148 = vmatpush.msra.mxu0 0.0
    %149 = vmatpush.msra.mxu0 0.0
    %150 = vmatpush.msra.mxu0 0.0
    %151 = vmatpush.msra.mxu0 0.0
    %152 = vmatpush.msra.mxu0 0.0
    %153 = vmatpush.msra.mxu0 %v130
    %154 = vmatpush.msra.mxu0 %v128
    %155 = vmatmul.f32.gmra.mxu0 %v134
    %v156 = vpop.f32.mrf.mxu0
    %v157 = vadd.f32 0.0, %v156
    %158 = vmatmul.f32.gmra.mxu0 %v137
    %v159 = vpop.f32.mrf.mxu0
    %v160 = vadd.f32 0.0, %v159
    %161 = vdwg.mxu0
    %v162 = vrcp.pop %v123
    %v163 = vrcp.pop %v126
    %v164 = vmul.f32 %v157, %v162
    %v165 = vmul.f32 %v160, %v163
    %166 = vrot.lane.b32.xlu0 %v65, 120
    %v167 = vpop.permute.xlu0 %166
    %168 = vrot.lane.b32.xlu0 %v68, 120
    %v169 = vpop.permute.xlu0 %168
    %170 = vrot.lane.b32.xlu0 %v65, 88
    %v171 = vpop.permute.xlu0 %170
    %172 = vrot.lane.b32.xlu0 %v68, 88
    %v173 = vpop.permute.xlu0 %172
    %v174 = vsel %vm76, %v167, 0
    %v176 = vsel %vm76, %v169, 0
    %v178 = vsel %vm76, %v171, 0
    %v180 = vsel %vm76, %v173, 0
    %182 = vmatpush.xpose.msra.mxu0 0.0
    %183 = vmatpush.xpose.msra.mxu0 0.0
    %184 = vmatpush.xpose.msra.mxu0 0.0
    %185 = vmatpush.xpose.msra.mxu0 0.0
    %186 = vmatpush.xpose.msra.mxu0 0.0
    %187 = vmatpush.xpose.msra.mxu0 0.0
    %188 = vmatpush.xpose.msra.mxu0 0.0
    %189 = vmatpush.xpose.msra.mxu0 0.0
    %190 = vmatpush.xpose.msra.mxu0 0.0
    %191 = vmatpush.xpose.msra.mxu0 0.0
    %192 = vmatpush.xpose.msra.mxu0 0.0
    %193 = vmatpush.xpose.msra.mxu0 0.0
    %194 = vmatpush.xpose.msra.mxu0 0.0
    %195 = vmatpush.xpose.msra.mxu0 0.0
    %196 = vmatpush.xpose.msra.mxu0 %v180
    %197 = vmatpush.xpose.msra.mxu0 %v178
    %198 = vmatmul.f32.gmra.mxu0 %v174
    %v199 = vpop.f32.mrf.mxu0
    %v200 = vadd.f32 %v17, %v199
    %201 = vmatmul.f32.gmra.mxu0 %v176
    %v202 = vpop.f32.mrf.mxu0
    %v203 = vadd.f32 %v18, %v202
    %204 = vdwg.mxu0
    %v205 = vsel %vm108, %v200, -inf
    %206 = vmax.xlane.f32.xlu0 %v205
    %v207 = vpop.xlane.xlu0 %206
    %v208 = vsel %vm108, %v203, -inf
    %209 = vmax.xlane.f32.xlu0 %v208
    %v210 = vpop.xlane.xlu0 %209
    %v211 = vsub.f32 %v200, %v207
    %v212 = vsub.f32 %v203, %v210
    %v213 = vmul.f32 %v211, 1.442695
    %v214 = vpow.pop %v213
    %v215 = vmul.f32 %v212, 1.442695
    %v216 = vpow.pop %v215
    %v217 = vsel %vm108, %v214, 0.0
    %218 = vadd.xlane.f32.xlu0 %v217
    %v219 = vpop.xlane.xlu0 %218
    %v220 = vsel %vm108, %v216, 0.0
    %221 = vadd.xlane.f32.xlu0 %v220
    %v222 = vpop.xlane.xlu0 %221
    %223 = vrot.lane.b32.xlu0 %v65, 56
    %v224 = vpop.permute.xlu0 %223
    %225 = vrot.lane.b32.xlu0 %v68, 56
    %v226 = vpop.permute.xlu0 %225
    %v230 = vsel %vm108, %v214, 0
    %v233 = vsel %vm108, %v216, 0
    %235 = vmatpush.msra.mxu0 0.0
    %236 = vmatpush.msra.mxu0 0.0
    %237 = vmatpush.msra.mxu0 0.0
    %238 = vmatpush.msra.mxu0 0.0
    %239 = vmatpush.msra.mxu0 0.0
    %240 = vmatpush.msra.mxu0 0.0
    %241 = vmatpush.msra.mxu0 0.0
    %242 = vmatpush.msra.mxu0 0.0
    %243 = vmatpush.msra.mxu0 0.0
    %244 = vmatpush.msra.mxu0 0.0
    %245 = vmatpush.msra.mxu0 0.0
    %246 = vmatpush.msra.mxu0 0.0
    %247 = vmatpush.msra.mxu0 0.0
    %248 = vmatpush.msra.mxu0 0.0
    %249 = vmatpush.msra.mxu0 %v226
    %250 = vmatpush.msra.mxu0 %v224
    %251 = vmatmul.f32.gmra.mxu0 %v230
    %v252 = vpop.f32.mrf.mxu0
    %v253 = vadd.f32 0.0, %v252
    %254 = vmatmul.f32.gmra.mxu0 %v233
    %v255 = vpop.f32.mrf.mxu0
    %v256 = vadd.f32 0.0, %v255
    %257 = vdwg.mxu0
    %v258 = vrcp.pop %v219
    %v259 = vrcp.pop %v222
    %v260 = vmul.f32 %v253, %v258
    %v261 = vmul.f32 %v256, %v259
    %262 = vrot.lane.b32.xlu0 %v65, 112
    %v263 = vpop.permute.xlu0 %262
    %264 = vrot.lane.b32.xlu0 %v68, 112
    %v265 = vpop.permute.xlu0 %264
    %266 = vrot.lane.b32.xlu0 %v65, 80
    %v267 = vpop.permute.xlu0 %266
    %268 = vrot.lane.b32.xlu0 %v68, 80
    %v269 = vpop.permute.xlu0 %268
    %v270 = vsel %vm76, %v263, 0
    %v272 = vsel %vm76, %v265, 0
    %v274 = vsel %vm76, %v267, 0
    %v276 = vsel %vm76, %v269, 0
    %278 = vmatpush.xpose.msra.mxu0 0.0
    %279 = vmatpush.xpose.msra.mxu0 0.0
    %280 = vmatpush.xpose.msra.mxu0 0.0
    %281 = vmatpush.xpose.msra.mxu0 0.0
    %282 = vmatpush.xpose.msra.mxu0 0.0
    %283 = vmatpush.xpose.msra.mxu0 0.0
    %284 = vmatpush.xpose.msra.mxu0 0.0
    %285 = vmatpush.xpose.msra.mxu0 0.0
    %286 = vmatpush.xpose.msra.mxu0 0.0
    %287 = vmatpush.xpose.msra.mxu0 0.0
    %288 = vmatpush.xpose.msra.mxu0 0.0
    %289 = vmatpush.xpose.msra.mxu0 0.0
    %290 = vmatpush.xpose.msra.mxu0 0.0
    %291 = vmatpush.xpose.msra.mxu0 0.0
    %292 = vmatpush.xpose.msra.mxu0 %v276
    %293 = vmatpush.xpose.msra.mxu0 %v274
    %294 = vmatmul.f32.gmra.mxu0 %v270
    %v295 = vpop.f32.mrf.mxu0
    %v296 = vadd.f32 %v17, %v295
    %297 = vmatmul.f32.gmra.mxu0 %v272
    %v298 = vpop.f32.mrf.mxu0
    %v299 = vadd.f32 %v18, %v298
    %300 = vdwg.mxu0
    %v301 = vsel %vm108, %v296, -inf
    %302 = vmax.xlane.f32.xlu0 %v301
    %v303 = vpop.xlane.xlu0 %302
    %v304 = vsel %vm108, %v299, -inf
    %305 = vmax.xlane.f32.xlu0 %v304
    %v306 = vpop.xlane.xlu0 %305
    %v307 = vsub.f32 %v296, %v303
    %v308 = vsub.f32 %v299, %v306
    %v309 = vmul.f32 %v307, 1.442695
    %v310 = vpow.pop %v309
    %v311 = vmul.f32 %v308, 1.442695
    %v312 = vpow.pop %v311
    %v313 = vsel %vm108, %v310, 0.0
    %314 = vadd.xlane.f32.xlu0 %v313
    %v315 = vpop.xlane.xlu0 %314
    %v316 = vsel %vm108, %v312, 0.0
    %317 = vadd.xlane.f32.xlu0 %v316
    %v318 = vpop.xlane.xlu0 %317
    %319 = vrot.lane.b32.xlu0 %v65, 48
    %v320 = vpop.permute.xlu0 %319
    %321 = vrot.lane.b32.xlu0 %v68, 48
    %v322 = vpop.permute.xlu0 %321
    %v326 = vsel %vm108, %v310, 0
    %v329 = vsel %vm108, %v312, 0
    %331 = vmatpush.msra.mxu0 0.0
    %332 = vmatpush.msra.mxu0 0.0
    %333 = vmatpush.msra.mxu0 0.0
    %334 = vmatpush.msra.mxu0 0.0
    %335 = vmatpush.msra.mxu0 0.0
    %336 = vmatpush.msra.mxu0 0.0
    %337 = vmatpush.msra.mxu0 0.0
    %338 = vmatpush.msra.mxu0 0.0
    %339 = vmatpush.msra.mxu0 0.0
    %340 = vmatpush.msra.mxu0 0.0
    %341 = vmatpush.msra.mxu0 0.0
    %342 = vmatpush.msra.mxu0 0.0
    %343 = vmatpush.msra.mxu0 0.0
    %344 = vmatpush.msra.mxu0 0.0
    %345 = vmatpush.msra.mxu0 %v322
    %346 = vmatpush.msra.mxu0 %v320
    %347 = vmatmul.f32.gmra.mxu0 %v326
    %v348 = vpop.f32.mrf.mxu0
    %v349 = vadd.f32 0.0, %v348
    %350 = vmatmul.f32.gmra.mxu0 %v329
    %v351 = vpop.f32.mrf.mxu0
    %v352 = vadd.f32 0.0, %v351
    %353 = vdwg.mxu0
    %v354 = vrcp.pop %v315
    %v355 = vrcp.pop %v318
    %v356 = vmul.f32 %v349, %v354
    %v357 = vmul.f32 %v352, %v355
    %358 = vrot.lane.b32.xlu0 %v65, 104
    %v359 = vpop.permute.xlu0 %358
    %360 = vrot.lane.b32.xlu0 %v68, 104
    %v361 = vpop.permute.xlu0 %360
    %362 = vrot.lane.b32.xlu0 %v65, 72
    %v363 = vpop.permute.xlu0 %362
    %364 = vrot.lane.b32.xlu0 %v68, 72
    %v365 = vpop.permute.xlu0 %364
    %v366 = vsel %vm76, %v359, 0
    %v368 = vsel %vm76, %v361, 0
    %v370 = vsel %vm76, %v363, 0
    %v372 = vsel %vm76, %v365, 0
    %374 = vmatpush.xpose.msra.mxu0 0.0
    %375 = vmatpush.xpose.msra.mxu0 0.0
    %376 = vmatpush.xpose.msra.mxu0 0.0
    %377 = vmatpush.xpose.msra.mxu0 0.0
    %378 = vmatpush.xpose.msra.mxu0 0.0
    %379 = vmatpush.xpose.msra.mxu0 0.0
    %380 = vmatpush.xpose.msra.mxu0 0.0
    %381 = vmatpush.xpose.msra.mxu0 0.0
    %382 = vmatpush.xpose.msra.mxu0 0.0
    %383 = vmatpush.xpose.msra.mxu0 0.0
    %384 = vmatpush.xpose.msra.mxu0 0.0
    %385 = vmatpush.xpose.msra.mxu0 0.0
    %386 = vmatpush.xpose.msra.mxu0 0.0
    %387 = vmatpush.xpose.msra.mxu0 0.0
    %388 = vmatpush.xpose.msra.mxu0 %v372
    %389 = vmatpush.xpose.msra.mxu0 %v370
    %390 = vmatmul.f32.gmra.mxu0 %v366
    %v391 = vpop.f32.mrf.mxu0
    %v392 = vadd.f32 %v17, %v391
    %393 = vmatmul.f32.gmra.mxu0 %v368
    %v394 = vpop.f32.mrf.mxu0
    %v395 = vadd.f32 %v18, %v394
    %396 = vdwg.mxu0
    %v397 = vsel %vm108, %v392, -inf
    %398 = vmax.xlane.f32.xlu0 %v397
    %v399 = vpop.xlane.xlu0 %398
    %v400 = vsel %vm108, %v395, -inf
    %401 = vmax.xlane.f32.xlu0 %v400
    %v402 = vpop.xlane.xlu0 %401
    %v403 = vsub.f32 %v392, %v399
    %v404 = vsub.f32 %v395, %v402
    %v405 = vmul.f32 %v403, 1.442695
    %v406 = vpow.pop %v405
    %v407 = vmul.f32 %v404, 1.442695
    %v408 = vpow.pop %v407
    %v409 = vsel %vm108, %v406, 0.0
    %410 = vadd.xlane.f32.xlu0 %v409
    %v411 = vpop.xlane.xlu0 %410
    %v412 = vsel %vm108, %v408, 0.0
    %413 = vadd.xlane.f32.xlu0 %v412
    %v414 = vpop.xlane.xlu0 %413
    %415 = vrot.lane.b32.xlu0 %v65, 40
    %v416 = vpop.permute.xlu0 %415
    %417 = vrot.lane.b32.xlu0 %v68, 40
    %v418 = vpop.permute.xlu0 %417
    %v422 = vsel %vm108, %v406, 0
    %v425 = vsel %vm108, %v408, 0
    %427 = vmatpush.msra.mxu0 0.0
    %428 = vmatpush.msra.mxu0 0.0
    %429 = vmatpush.msra.mxu0 0.0
    %430 = vmatpush.msra.mxu0 0.0
    %431 = vmatpush.msra.mxu0 0.0
    %432 = vmatpush.msra.mxu0 0.0
    %433 = vmatpush.msra.mxu0 0.0
    %434 = vmatpush.msra.mxu0 0.0
    %435 = vmatpush.msra.mxu0 0.0
    %436 = vmatpush.msra.mxu0 0.0
    %437 = vmatpush.msra.mxu0 0.0
    %438 = vmatpush.msra.mxu0 0.0
    %439 = vmatpush.msra.mxu0 0.0
    %440 = vmatpush.msra.mxu0 0.0
    %441 = vmatpush.msra.mxu0 %v418
    %442 = vmatpush.msra.mxu0 %v416
    %443 = vmatmul.f32.gmra.mxu0 %v422
    %v444 = vpop.f32.mrf.mxu0
    %v445 = vadd.f32 0.0, %v444
    %446 = vmatmul.f32.gmra.mxu0 %v425
    %v447 = vpop.f32.mrf.mxu0
    %v448 = vadd.f32 0.0, %v447
    %449 = vdwg.mxu0
    %v450 = vrcp.pop %v411
    %v451 = vrcp.pop %v414
    %v452 = vmul.f32 %v445, %v450
    %v453 = vmul.f32 %v448, %v451
    %456 = vrot.lane.b32.xlu0 %v260, 8
    %v457 = vpop.permute.xlu0 %456
    %458 = vrot.lane.b32.xlu0 %v261, 8
    %v459 = vpop.permute.xlu0 %458
    %464 = vrot.lane.b32.xlu0 %v356, 16
    %v465 = vpop.permute.xlu0 %464
    %466 = vrot.lane.b32.xlu0 %v357, 16
    %v467 = vpop.permute.xlu0 %466
    %472 = vrot.lane.b32.xlu0 %v452, 24
    %v473 = vpop.permute.xlu0 %472
    %474 = vrot.lane.b32.xlu0 %v453, 24
    %v475 = vpop.permute.xlu0 %474
    %v478 = vsel %vm76, %v164, %v457
    %v479 = vsel %vm76, %v165, %v459
    %v480 = vsel %vm108, %v478, %v465
    %v481 = vsel %vm108, %v479, %v467
    %vm482 = vcmask 195584
    %v483 = vsel %vm482, %v480, %v473
    %v484 = vsel %vm482, %v481, %v475
    %v485 = vperm.slane %v36, 0
    %v487 = vsel %vm40, %v483, 0
    %v490 = vsel %vm40, %v484, 0
    %492 = vmatpush.msra.mxu0 0.0
    %493 = vmatpush.msra.mxu0 0.0
    %494 = vmatpush.msra.mxu0 0.0
    %495 = vmatpush.msra.mxu0 0.0
    %496 = vmatpush.msra.mxu0 0.0
    %497 = vmatpush.msra.mxu0 0.0
    %498 = vmatpush.msra.mxu0 0.0
    %499 = vmatpush.msra.mxu0 0.0
    %500 = vmatpush.msra.mxu0 0.0
    %501 = vmatpush.msra.mxu0 0.0
    %502 = vmatpush.msra.mxu0 0.0
    %503 = vmatpush.msra.mxu0 0.0
    %504 = vmatpush.msra.mxu0 %v26
    %505 = vmatpush.msra.mxu0 %v25
    %506 = vmatpush.msra.mxu0 %v24
    %507 = vmatpush.msra.mxu0 %v23
    %508 = vmatmul.f32.gmra.mxu0 %v487
    %v509 = vpop.f32.mrf.mxu0
    %v510 = vadd.f32 %v485, %v509
    %511 = vmatmul.f32.gmra.mxu0 %v490
    %v512 = vpop.f32.mrf.mxu0
    %v513 = vadd.f32 %v485, %v512
    %514 = vdwg.mxu0
    %v515 = vperm.slane %v37, 0
    %520 = vrot.lane.b32.xlu0 %v23, 64
    %v521 = vpop.permute.xlu0 %520
    %522 = vrot.lane.b32.xlu0 %v24, 64
    %v523 = vpop.permute.xlu0 %522
    %524 = vrot.lane.b32.xlu0 %v25, 64
    %v525 = vpop.permute.xlu0 %524
    %526 = vrot.lane.b32.xlu0 %v26, 64
    %v527 = vpop.permute.xlu0 %526
    %v533 = vsel %vm40, %v510, 0
    %v536 = vsel %vm40, %v513, 0
    %538 = vmatpush.msra.mxu0 0.0
    %539 = vmatpush.msra.mxu0 0.0
    %540 = vmatpush.msra.mxu0 0.0
    %541 = vmatpush.msra.mxu0 0.0
    %542 = vmatpush.msra.mxu0 0.0
    %543 = vmatpush.msra.mxu0 0.0
    %544 = vmatpush.msra.mxu0 0.0
    %545 = vmatpush.msra.mxu0 0.0
    %546 = vmatpush.msra.mxu0 0.0
    %547 = vmatpush.msra.mxu0 0.0
    %548 = vmatpush.msra.mxu0 0.0
    %549 = vmatpush.msra.mxu0 0.0
    %550 = vmatpush.msra.mxu0 %v527
    %551 = vmatpush.msra.mxu0 %v525
    %552 = vmatpush.msra.mxu0 %v523
    %553 = vmatpush.msra.mxu0 %v521
    %554 = vmatmul.f32.gmra.mxu0 %v533
    %v555 = vpop.f32.mrf.mxu0
    %v556 = vadd.f32 %v515, %v555
    %557 = vmatmul.f32.gmra.mxu0 %v536
    %v558 = vpop.f32.mrf.mxu0
    %v559 = vadd.f32 %v515, %v558
    %560 = vdwg.mxu0
    %v561 = vmax.f32 %v556, 0.0
    %v562 = vmax.f32 %v559, 0.0
    %v563 = vperm.slane %v38, 0
    %vm564 = vcmask 523264
    %v566 = vsel %vm564, %v561, 0
    %v569 = vsel %vm564, %v562, 0
    %571 = vmatpush.msra.mxu0 0.0
    %572 = vmatpush.msra.mxu0 0.0
    %573 = vmatpush.msra.mxu0 0.0
    %574 = vmatpush.msra.mxu0 0.0
    %575 = vmatpush.msra.mxu0 0.0
    %576 = vmatpush.msra.mxu0 0.0
    %577 = vmatpush.msra.mxu0 0.0
    %578 = vmatpush.msra.mxu0 0.0
    %579 = vmatpush.msra.mxu0 %v34
    %580 = vmatpush.msra.mxu0 %v33
    %581 = vmatpush.msra.mxu0 %v32
    %582 = vmatpush.msra.mxu0 %v31
    %583 = vmatpush.msra.mxu0 %v30
    %584 = vmatpush.msra.mxu0 %v29
    %585 = vmatpush.msra.mxu0 %v28
    %586 = vmatpush.msra.mxu0 %v27
    %587 = vmatmul.f32.gmra.mxu0 %v566
    %v588 = vpop.f32.mrf.mxu0
    %v589 = vadd.f32 %v563, %v588
    %590 = vmatmul.f32.gmra.mxu0 %v569
    %v591 = vpop.f32.mrf.mxu0
    %v592 = vadd.f32 %v563, %v591
    %593 = vdwg.mxu0
    %594 = vst.msk [vmem:[#allocation2] sm:$0xff] %vm40, %v589
    %595 = vst.msk [vmem:[#allocation2 + $0x8] sm:$0xff] %vm40, %v592
    // Predicated region
    $region14: #{encoder_layer_ffn.1} parent=1 // pred_check
      _
    $region15: #{encoder_layer_ffn.1} parent=1 // pred_check_branch
      %597 = sbr.rel (0) target = $region17
    $region16: #{encoder_layer_ffn.1} parent=1 // pred_region
      %599 = vsyncadd [#allocation3], 0
      %s600 = sshll.u32 [#allocation2], 4
      %s601 = int_to_ptr.vmem [resolvable:$true] %s600
      %s602 = sshll.u32 %s3, 4
      %s603 = int_to_ptr.hbm [resolvable:$true] %s602
      %608 = dma.vmem_to_hbm [thread:$0]  %s601, 256, %s603, [#allocation3], 128, 128, 8
    $region17: #{encoder_layer_ffn.1} parent=1 // pred_fallthru
      _
    // Predicated region
    $region18: #{encoder_layer_ffn.1} parent=1 // pred_check
      _
    $region19: #{encoder_layer_ffn.1} parent=1 // pred_check_branch
      %610 = sbr.rel (0) target = $region21
    $region20: #{encoder_layer_ffn.1} parent=1 // pred_region
      %612 = dma.done [#allocation3], 256
    $region21: #{encoder_layer_ffn.1} parent=1 // pred_fallthru
      _
    %613 = vsyncpa [#allocation3], 1

</llo_original>
